<compile_context>
chip_gen: v7x
topology: tpu7x:2x2x1
jax: 0.10.0
libtpu: 0.0.40
codegen_flags: <defaults>
</compile_context>

<pallas_src>
import functools

import jax
import jax.numpy as jnp
from jax.experimental import pallas as pl
from jax.experimental.pallas import tpu as pltpu

LN_EPS = 1e-5  # nn.LayerNorm default


def residual_kernel(x_ref, w_ref, b_ref, g_ref, beta_ref, o_ref, *, d_true):
    # x_ref   : (TM, Dp)  input rows (native dtype)
    # w_ref   : (Dp, Dp)  sublayer (Linear) weight, laid out as x @ W
    # b_ref   : (1, Dp)   sublayer bias        (zero in padded lanes)
    # g_ref   : (1, Dp)   LayerNorm gamma      (zero in padded lanes)
    # beta_ref: (1, Dp)   LayerNorm beta       (zero in padded lanes)
    # d_true  : static true hidden size (<= Dp); padded lanes of x/W/b are 0.
    x = x_ref[...]
    dp = x.shape[-1]

    # Sublayer: Linear(d, d) on the MXU.  Operands in the weight dtype
    # (bf16 by default -> single-pass MXU), f32 accumulation.
    y = jnp.dot(x.astype(w_ref.dtype), w_ref[...],
                preferred_element_type=jnp.float32)

    # Dropout (eval mode => identity) + bias + residual add, in f32.
    h = x.astype(jnp.float32) + y + b_ref[...]

    # LayerNorm over the true hidden size, two-pass (centered) variance.
    inv_d = 1.0 / float(d_true)
    mean = jnp.sum(h, axis=-1, keepdims=True) * inv_d   # padded lanes of h == 0
    centered = h - mean
    if d_true < dp:
        # Lane-padded case: zero the padded lanes so they don't bias the
        # centered sum-of-squares.
        lane = jax.lax.broadcasted_iota(jnp.int32, h.shape, dimension=1)
        centered = jnp.where(lane < d_true, centered, 0.0)
    var = jnp.sum(centered * centered, axis=-1, keepdims=True) * inv_d
    inv_std = jax.lax.rsqrt(var + LN_EPS)

    out = centered * inv_std * g_ref[...] + beta_ref[...]
    o_ref[...] = out.astype(o_ref.dtype)


def residual_forward(x, w, b, gamma, beta, *, tm=512, weight_dtype=None,
                     out_dtype=None):
    """x: (B, S, D).  Returns LayerNorm(x + x @ w + b) with per-row norm.

    weight_dtype: dtype of the matmul operands (default bf16; accumulation and
    LayerNorm stay f32).  out_dtype: output dtype (default x.dtype); pass
    jnp.bfloat16 on v5e to halve output HBM writeback if downstream allows.
    """
    B, S, D = x.shape
    M = B * S
    dt = x.dtype
    odt = jnp.dtype(out_dtype) if out_dtype is not None else jnp.dtype(dt)
    w_dt = jnp.dtype(weight_dtype) if weight_dtype is not None \
        else jnp.dtype(jnp.bfloat16)

    # Lane-dense hidden dim: pad D up to a multiple of 128 only when needed.
    Dp = max(128, pl.cdiv(D, 128) * 128)
    lane_pad = (Dp != D)

    # Row tile: multiple of the sublane packing for the input dtype.
    sub = 8 if jnp.dtype(dt).itemsize >= 4 else 16
    tm = max(sub, (int(tm) // sub) * sub)
    TM = min(tm, pl.cdiv(M, sub) * sub)

    # Generation awareness: physical VMEM -> cap + tile size.
    try:
        phys_vmem = int(getattr(pltpu.get_tpu_info(), "vmem_capacity_bytes",
                                64 * 1024 * 1024))
    except Exception:
        phys_vmem = 64 * 1024 * 1024
    vmem_cap = int(phys_vmem * 0.8)          # leave headroom for compiler scratch
    if Dp >= 2048 and phys_vmem <= 64 * 1024 * 1024:
        TM = min(TM, 256)                    # v7x-class: keep double-buffering

    # Megacore (v7x has 2 TCs): give the "parallel" axis at least 2 tiles when
    # there is enough work.  Harmless on single-TC v5e/v6e.
    if pl.cdiv(M, TM) < 2 and M > 2 * sub:
        TM = pl.cdiv(pl.cdiv(M, 2), sub) * sub
    grid = (pl.cdiv(M, TM),)

    # ---- operand construction (no HBM copy of x on the lane-aligned path) ----
    xr = x.reshape(M, D)
    if lane_pad:
        x_in = jnp.zeros((M, Dp), dt).at[:, :D].set(xr)
        w_in = jnp.zeros((Dp, Dp), w_dt).at[:D, :D].set(w.astype(w_dt))
        b_in = jnp.zeros((1, Dp), jnp.float32).at[0, :D].set(b.astype(jnp.float32))
        g_in = jnp.zeros((1, Dp), jnp.float32).at[0, :D].set(gamma.astype(jnp.float32))
        bt_in = jnp.zeros((1, Dp), jnp.float32).at[0, :D].set(beta.astype(jnp.float32))
    else:
        x_in = xr
        w_in = w.astype(w_dt)
        b_in = b.astype(jnp.float32).reshape(1, D)
        g_in = gamma.astype(jnp.float32).reshape(1, D)
        bt_in = beta.astype(jnp.float32).reshape(1, D)

    # VMEM budget: double-buffered x/out tiles, single-buffered resident W,
    # f32 temporaries headroom.
    isz = jnp.dtype(dt).itemsize
    osz = jnp.dtype(odt).itemsize
    wsz = jnp.dtype(w_dt).itemsize
    work = (2 * TM * Dp * isz            # x double buffer
            + 2 * TM * Dp * osz          # out double buffer
            + Dp * Dp * wsz              # resident weight (single buffer)
            + 3 * Dp * 4                 # bias / gamma / beta
            + 4 * TM * Dp * 4)           # f32 temporaries headroom
    vmem_limit = int(min(max(int(1.5 * work), 32 * 1024 * 1024), vmem_cap))

    cost = pl.CostEstimate(
        flops=2 * M * Dp * Dp,
        transcendentals=M,               # one rsqrt per row
        bytes_accessed=M * Dp * isz + Dp * Dp * wsz + M * Dp * osz)

    def _call(resident_mode):
        kw = {} if resident_mode is None else {"pipeline_mode": resident_mode}

        def resident(shape):
            return pl.BlockSpec(shape, lambda i: (0, 0), **kw)

        return pl.pallas_call(
            functools.partial(residual_kernel, d_true=D),
            out_shape=jax.ShapeDtypeStruct((M, Dp), odt),
            grid_spec=pltpu.PrefetchScalarGridSpec(
                num_scalar_prefetch=0,
                grid=grid,
                in_specs=[
                    pl.BlockSpec((TM, Dp), lambda i: (i, 0)),   # x (pipelined)
                    resident((Dp, Dp)),                         # W      (resident)
                    resident((1, Dp)),                          # bias   (resident)
                    resident((1, Dp)),                          # gamma  (resident)
                    resident((1, Dp)),                          # beta   (resident)
                ],
                out_specs=pl.BlockSpec((TM, Dp), lambda i: (i, 0)),
            ),
            compiler_params=pltpu.CompilerParams(
                dimension_semantics=("parallel",),   # megacore-shardable on v7x
                vmem_limit_bytes=vmem_limit,
            ),
            cost_estimate=cost,
        )(x_in, w_in, b_in, g_in, bt_in)

    try:
        out = _call(pl.Buffered(1))      # single-buffer the constant blocks
    except Exception:
        # TODO(synk): some jax versions reject buffer_count=1; fall back to the
        # default double-buffered resident blocks (costs extra VMEM only).
        out = _call(None)

    if lane_pad:
        out = out[:, :D]
    return out.reshape(B, S, D)


def reference_forward(x, w, b, gamma, beta, *, weight_dtype=None):
    """Pure-JAX reference matching PyTorch eval-mode semantics (matmul in the
    same operand dtype as the kernel, f32 accumulation)."""
    w_dt = jnp.dtype(weight_dtype) if weight_dtype is not None \
        else jnp.dtype(jnp.bfloat16)
    y = jnp.einsum("bsd,de->bse", x.astype(w_dt), w.astype(w_dt),
                   preferred_element_type=jnp.float32) + b.astype(jnp.float32)
    h = x.astype(jnp.float32) + y
    mean = jnp.mean(h, axis=-1, keepdims=True)
    var = jnp.mean((h - mean) ** 2, axis=-1, keepdims=True)
    normed = (h - mean) / jnp.sqrt(var + LN_EPS)
    return (normed * gamma + beta).astype(x.dtype)


def _make_params(key, D):
    kw, kb = jax.random.split(key)
    # Weight stored so the kernel computes x @ w (== PyTorch x @ W.T).
    w = jax.random.normal(kw, (D, D), dtype=jnp.float32) * (1.0 / jnp.sqrt(D))
    b = jax.random.normal(kb, (D,), dtype=jnp.float32) * 0.01
    gamma = jnp.ones((D,), dtype=jnp.float32)   # nn.LayerNorm default init
    beta = jnp.zeros((D,), dtype=jnp.float32)
    return w, b, gamma, beta


if __name__ == "__main__":
    key = jax.random.PRNGKey(0)

    # --- test 1: module's small shape (D=32 -> lane-padded), default bf16 W --
    B, S, D = 2, 8, 32
    k1, k2, k3 = jax.random.split(key, 3)
    x = jax.random.normal(k1, (B, S, D), dtype=jnp.float32)
    w, b, gamma, beta = _make_params(k2, D)

    out = jax.block_until_ready(residual_forward(x, w, b, gamma, beta))
    ref = reference_forward(x, w, b, gamma, beta)
    assert out.shape == (B, S, D)
    assert jnp.allclose(out, ref, atol=2e-4, rtol=2e-4), "mismatch vs reference (test 1)"

    # --- test 2: lane-aligned D=128 fast path (no pad/slice), f32 weights,
    #             multi-tile grid (exercises BlockSpec pipelining) ------------
    B2, S2, D2 = 2, 256, 128
    k4, k5 = jax.random.split(k3)
    x2 = jax.random.normal(k4, (B2, S2, D2), dtype=jnp.float32)
    w2, b2, gamma2, beta2 = _make_params(k5, D2)

    out2 = jax.block_until_ready(
        residual_forward(x2, w2, b2, gamma2, beta2, tm=64,
                         weight_dtype=jnp.float32))
    ref2_f32 = reference_forward(x2, w2, b2, gamma2, beta2,
                                 weight_dtype=jnp.float32)
    assert out2.shape == (B2, S2, D2)
    assert jnp.allclose(out2, ref2_f32, atol=5e-5, rtol=5e-5), \
        "mismatch vs reference (test 2)"

    # --- test 3: fast path + default bf16 weights + megacore tile split ------
    out3 = jax.block_until_ready(residual_forward(x2, w2, b2, gamma2, beta2))
    ref3 = reference_forward(x2, w2, b2, gamma2, beta2)
    assert jnp.allclose(out3, ref3, atol=2e-4, rtol=2e-4), \
        "mismatch vs reference (test 3)"

    print("KERNEL_OK")
</pallas_src>

<mosaic_0001>
module attributes {stable_mosaic.version = 11 : i64} {
  func.func @residual_kernel(%arg0: i32, %arg1: memref<16x128xf32, #tpu.memory_space<vmem>>, %arg2: memref<128x128xbf16, #tpu.memory_space<vmem>>, %arg3: memref<1x128xf32, #tpu.memory_space<vmem>>, %arg4: memref<1x128xf32, #tpu.memory_space<vmem>>, %arg5: memref<1x128xf32, #tpu.memory_space<vmem>>, %arg6: memref<16x128xf32, #tpu.memory_space<vmem>>) attributes {dimension_semantics = [#tpu.dimension_semantics<parallel>], iteration_bounds = array<i64: 1>, scalar_prefetch = 0 : i64, scratch_operands = 0 : i64, tpu.core_type = #tpu.core_type<tc>, window_params = [{transform_indices = @transform_0, window_bounds = array<i64: 16, 128>}, {pipeline_mode = #tpu.pipeline_mode<synchronous>, transform_indices = @transform_1, window_bounds = array<i64: 128, 128>}, {pipeline_mode = #tpu.pipeline_mode<synchronous>, transform_indices = @transform_2, window_bounds = array<i64: 1, 128>}, {pipeline_mode = #tpu.pipeline_mode<synchronous>, transform_indices = @transform_3, window_bounds = array<i64: 1, 128>}, {pipeline_mode = #tpu.pipeline_mode<synchronous>, transform_indices = @transform_4, window_bounds = array<i64: 1, 128>}, {transform_indices = @transform_5, window_bounds = array<i64: 16, 128>}]} {
    %c0 = arith.constant 0 : index
    %c0_0 = arith.constant 0 : index
    %0 = vector.load %arg1[%c0, %c0_0] : memref<16x128xf32, #tpu.memory_space<vmem>>, vector<16x128xf32>
    %1 = arith.truncf %0 : vector<16x128xf32> to vector<16x128xbf16>
    %c0_1 = arith.constant 0 : index
    %c0_2 = arith.constant 0 : index
    %2 = vector.load %arg2[%c0_1, %c0_2] : memref<128x128xbf16, #tpu.memory_space<vmem>>, vector<128x128xbf16>
    %cst = arith.constant dense<0.000000e+00> : vector<16x128xf32>
    %3 = tpu.matmul %1, %2, %cst {dimension_numbers = #tpu.dot_dimension_numbers<[1], [0], [0], [1], [0, 0, 1, 1], [], []>} : vector<16x128xbf16>, vector<128x128xbf16>, vector<16x128xf32> -> vector<16x128xf32>
    %4 = arith.addf %0, %3 : vector<16x128xf32>
    %c0_3 = arith.constant 0 : index
    %c0_4 = arith.constant 0 : index
    %5 = vector.load %arg3[%c0_3, %c0_4] : memref<1x128xf32, #tpu.memory_space<vmem>>, vector<1x128xf32>
    %6 = vector.broadcast %5 : vector<1x128xf32> to vector<16x128xf32>
    %7 = arith.addf %4, %6 : vector<16x128xf32>
    %cst_5 = arith.constant dense<0.000000e+00> : vector<16xf32>
    %8 = vector.multi_reduction <add>, %7, %cst_5 [1] : vector<16x128xf32> to vector<16xf32>
    %9 = vector.shape_cast %8 : vector<16xf32> to vector<16x1xf32>
    %cst_6 = arith.constant 3.125000e-02 : f32
    %10 = vector.broadcast %cst_6 : f32 to vector<16x1xf32>
    %11 = arith.mulf %9, %10 : vector<16x1xf32>
    %12 = vector.broadcast %11 : vector<16x1xf32> to vector<16x128xf32>
    %13 = arith.subf %7, %12 : vector<16x128xf32>
    %14 = tpu.iota {dimensions = array<i32: 1>} : vector<16x128xi32>
    %c32_i32 = arith.constant 32 : i32
    %15 = vector.broadcast %c32_i32 : i32 to vector<16x128xi32>
    %16 = arith.cmpi slt, %14, %15 : vector<16x128xi32>
    %cst_7 = arith.constant 0.000000e+00 : f32
    %17 = vector.broadcast %cst_7 : f32 to vector<16x128xf32>
    %18 = arith.select %16, %13, %17 : vector<16x128xi1>, vector<16x128xf32>
    %19 = arith.mulf %18, %18 : vector<16x128xf32>
    %cst_8 = arith.constant dense<0.000000e+00> : vector<16xf32>
    %20 = vector.multi_reduction <add>, %19, %cst_8 [1] : vector<16x128xf32> to vector<16xf32>
    %21 = vector.shape_cast %20 : vector<16xf32> to vector<16x1xf32>
    %cst_9 = arith.constant 3.125000e-02 : f32
    %22 = vector.broadcast %cst_9 : f32 to vector<16x1xf32>
    %23 = arith.mulf %21, %22 : vector<16x1xf32>
    %cst_10 = arith.constant 9.99999974E-6 : f32
    %24 = vector.broadcast %cst_10 : f32 to vector<16x1xf32>
    %25 = arith.addf %23, %24 : vector<16x1xf32>
    %26 = math.rsqrt %25 : vector<16x1xf32>
    %27 = vector.broadcast %26 : vector<16x1xf32> to vector<16x128xf32>
    %28 = arith.mulf %18, %27 : vector<16x128xf32>
    %c0_11 = arith.constant 0 : index
    %c0_12 = arith.constant 0 : index
    %29 = vector.load %arg4[%c0_11, %c0_12] : memref<1x128xf32, #tpu.memory_space<vmem>>, vector<1x128xf32>
    %30 = vector.broadcast %29 : vector<1x128xf32> to vector<16x128xf32>
    %31 = arith.mulf %28, %30 : vector<16x128xf32>
    %c0_13 = arith.constant 0 : index
    %c0_14 = arith.constant 0 : index
    %32 = vector.load %arg5[%c0_13, %c0_14] : memref<1x128xf32, #tpu.memory_space<vmem>>, vector<1x128xf32>
    %33 = vector.broadcast %32 : vector<1x128xf32> to vector<16x128xf32>
    %34 = arith.addf %31, %33 : vector<16x128xf32>
    %c0_15 = arith.constant 0 : index
    %c0_16 = arith.constant 0 : index
    %35 = vector.load %arg6[%c0_15, %c0_16] : memref<16x128xf32, #tpu.memory_space<vmem>>, vector<16x128xf32>
    tpu.vector_store %arg6[%c0_15, %c0_16], %34 {strides = array<i32>} : memref<16x128xf32, #tpu.memory_space<vmem>>, vector<16x128xf32>,
    return
  }
  func.func @transform_0(%arg0: i32) -> (i32, i32) {
    %c0_i32 = arith.constant 0 : i32
    %c0_i32_0 = arith.constant 0 : i32
    return %arg0, %c0_i32 : i32, i32
  }
  func.func @transform_1(%arg0: i32) -> (i32, i32) {
    %c0_i32 = arith.constant 0 : i32
    %c0_i32_0 = arith.constant 0 : i32
    %c0_i32_1 = arith.constant 0 : i32
    return %c0_i32, %c0_i32_0 : i32, i32
  }
  func.func @transform_2(%arg0: i32) -> (i32, i32) {
    %c0_i32 = arith.constant 0 : i32
    %c0_i32_0 = arith.constant 0 : i32
    %c0_i32_1 = arith.constant 0 : i32
    return %c0_i32, %c0_i32_0 : i32, i32
  }
  func.func @transform_3(%arg0: i32) -> (i32, i32) {
    %c0_i32 = arith.constant 0 : i32
    %c0_i32_0 = arith.constant 0 : i32
    %c0_i32_1 = arith.constant 0 : i32
    return %c0_i32, %c0_i32_0 : i32, i32
  }
  func.func @transform_4(%arg0: i32) -> (i32, i32) {
    %c0_i32 = arith.constant 0 : i32
    %c0_i32_0 = arith.constant 0 : i32
    %c0_i32_1 = arith.constant 0 : i32
    return %c0_i32, %c0_i32_0 : i32, i32
  }
  func.func @transform_5(%arg0: i32) -> (i32, i32) {
    %c0_i32 = arith.constant 0 : i32
    %c0_i32_0 = arith.constant 0 : i32
    return %arg0, %c0_i32 : i32, i32
  }
}

module attributes {stable_mosaic.version = 11 : i64} {
  func.func @residual_kernel(%arg0: i32, %arg1: memref<16x128xf32, #tpu.memory_space<vmem>>, %arg2: memref<128x128xbf16, #tpu.memory_space<vmem>>, %arg3: memref<1x128xf32, #tpu.memory_space<vmem>>, %arg4: memref<1x128xf32, #tpu.memory_space<vmem>>, %arg5: memref<1x128xf32, #tpu.memory_space<vmem>>, %arg6: memref<16x128xf32, #tpu.memory_space<vmem>>) attributes {dimension_semantics = [#tpu.dimension_semantics<parallel>], iteration_bounds = array<i64: 1>, scalar_prefetch = 0 : i64, scratch_operands = 0 : i64, tpu.core_type = #tpu.core_type<tc>, window_params = [{transform_indices = @transform_0, window_bounds = array<i64: 16, 128>}, {pipeline_mode = #tpu.pipeline_mode<synchronous>, transform_indices = @transform_1, window_bounds = array<i64: 128, 128>}, {pipeline_mode = #tpu.pipeline_mode<synchronous>, transform_indices = @transform_2, window_bounds = array<i64: 1, 128>}, {pipeline_mode = #tpu.pipeline_mode<synchronous>, transform_indices = @transform_3, window_bounds = array<i64: 1, 128>}, {pipeline_mode = #tpu.pipeline_mode<synchronous>, transform_indices = @transform_4, window_bounds = array<i64: 1, 128>}, {transform_indices = @transform_5, window_bounds = array<i64: 16, 128>}]} {
    %c0 = arith.constant 0 : index
    %c0_0 = arith.constant 0 : index
    %0 = vector.load %arg1[%c0, %c0_0] : memref<16x128xf32, #tpu.memory_space<vmem>>, vector<16x128xf32>
    %1 = arith.truncf %0 : vector<16x128xf32> to vector<16x128xbf16>
    %c0_1 = arith.constant 0 : index
    %c0_2 = arith.constant 0 : index
    %2 = vector.load %arg2[%c0_1, %c0_2] : memref<128x128xbf16, #tpu.memory_space<vmem>>, vector<128x128xbf16>
    %cst = arith.constant dense<0.000000e+00> : vector<16x128xf32>
    %3 = tpu.matmul %1, %2, %cst {dimension_numbers = #tpu.dot_dimension_numbers<[1], [0], [0], [1], [0, 0, 1, 1], [], []>} : vector<16x128xbf16>, vector<128x128xbf16>, vector<16x128xf32> -> vector<16x128xf32>
    %4 = arith.addf %0, %3 : vector<16x128xf32>
    %c0_3 = arith.constant 0 : index
    %c0_4 = arith.constant 0 : index
    %5 = vector.load %arg3[%c0_3, %c0_4] : memref<1x128xf32, #tpu.memory_space<vmem>>, vector<1x128xf32>
    %6 = vector.broadcast %5 : vector<1x128xf32> to vector<16x128xf32>
    %7 = arith.addf %4, %6 : vector<16x128xf32>
    %cst_5 = arith.constant dense<0.000000e+00> : vector<16xf32>
    %8 = vector.multi_reduction <add>, %7, %cst_5 [1] : vector<16x128xf32> to vector<16xf32>
    %9 = vector.shape_cast %8 : vector<16xf32> to vector<16x1xf32>
    %cst_6 = arith.constant 3.125000e-02 : f32
    %10 = vector.broadcast %cst_6 : f32 to vector<16x1xf32>
    %11 = arith.mulf %9, %10 : vector<16x1xf32>
    %12 = vector.broadcast %11 : vector<16x1xf32> to vector<16x128xf32>
    %13 = arith.subf %7, %12 : vector<16x128xf32>
    %14 = tpu.iota {dimensions = array<i32: 1>} : vector<16x128xi32>
    %c32_i32 = arith.constant 32 : i32
    %15 = vector.broadcast %c32_i32 : i32 to vector<16x128xi32>
    %16 = arith.cmpi slt, %14, %15 : vector<16x128xi32>
    %cst_7 = arith.constant 0.000000e+00 : f32
    %17 = vector.broadcast %cst_7 : f32 to vector<16x128xf32>
    %18 = arith.select %16, %13, %17 : vector<16x128xi1>, vector<16x128xf32>
    %19 = arith.mulf %18, %18 : vector<16x128xf32>
    %cst_8 = arith.constant dense<0.000000e+00> : vector<16xf32>
    %20 = vector.multi_reduction <add>, %19, %cst_8 [1] : vector<16x128xf32> to vector<16xf32>
    %21 = vector.shape_cast %20 : vector<16xf32> to vector<16x1xf32>
    %cst_9 = arith.constant 3.125000e-02 : f32
    %22 = vector.broadcast %cst_9 : f32 to vector<16x1xf32>
    %23 = arith.mulf %21, %22 : vector<16x1xf32>
    %cst_10 = arith.constant 9.99999974E-6 : f32
    %24 = vector.broadcast %cst_10 : f32 to vector<16x1xf32>
    %25 = arith.addf %23, %24 : vector<16x1xf32>
    %26 = math.rsqrt %25 : vector<16x1xf32>
    %27 = vector.broadcast %26 : vector<16x1xf32> to vector<16x128xf32>
    %28 = arith.mulf %18, %27 : vector<16x128xf32>
    %c0_11 = arith.constant 0 : index
    %c0_12 = arith.constant 0 : index
    %29 = vector.load %arg4[%c0_11, %c0_12] : memref<1x128xf32, #tpu.memory_space<vmem>>, vector<1x128xf32>
    %30 = vector.broadcast %29 : vector<1x128xf32> to vector<16x128xf32>
    %31 = arith.mulf %28, %30 : vector<16x128xf32>
    %c0_13 = arith.constant 0 : index
    %c0_14 = arith.constant 0 : index
    %32 = vector.load %arg5[%c0_13, %c0_14] : memref<1x128xf32, #tpu.memory_space<vmem>>, vector<1x128xf32>
    %33 = vector.broadcast %32 : vector<1x128xf32> to vector<16x128xf32>
    %34 = arith.addf %31, %33 : vector<16x128xf32>
    %c0_15 = arith.constant 0 : index
    %c0_16 = arith.constant 0 : index
    %35 = vector.load %arg6[%c0_15, %c0_16] : memref<16x128xf32, #tpu.memory_space<vmem>>, vector<16x128xf32>
    tpu.vector_store %arg6[%c0_15, %c0_16], %34 {strides = array<i32>} : memref<16x128xf32, #tpu.memory_space<vmem>>, vector<16x128xf32>,
    return
  }
  func.func @transform_0(%arg0: i32) -> (i32, i32) {
    %c0_i32 = arith.constant 0 : i32
    %c0_i32_0 = arith.constant 0 : i32
    return %arg0, %c0_i32 : i32, i32
  }
  func.func @transform_1(%arg0: i32) -> (i32, i32) {
    %c0_i32 = arith.constant 0 : i32
    %c0_i32_0 = arith.constant 0 : i32
    %c0_i32_1 = arith.constant 0 : i32
    return %c0_i32, %c0_i32_0 : i32, i32
  }
  func.func @transform_2(%arg0: i32) -> (i32, i32) {
    %c0_i32 = arith.constant 0 : i32
    %c0_i32_0 = arith.constant 0 : i32
    %c0_i32_1 = arith.constant 0 : i32
    return %c0_i32, %c0_i32_0 : i32, i32
  }
  func.func @transform_3(%arg0: i32) -> (i32, i32) {
    %c0_i32 = arith.constant 0 : i32
    %c0_i32_0 = arith.constant 0 : i32
    %c0_i32_1 = arith.constant 0 : i32
    return %c0_i32, %c0_i32_0 : i32, i32
  }
  func.func @transform_4(%arg0: i32) -> (i32, i32) {
    %c0_i32 = arith.constant 0 : i32
    %c0_i32_0 = arith.constant 0 : i32
    %c0_i32_1 = arith.constant 0 : i32
    return %c0_i32, %c0_i32_0 : i32, i32
  }
  func.func @transform_5(%arg0: i32) -> (i32, i32) {
    %c0_i32 = arith.constant 0 : i32
    %c0_i32_0 = arith.constant 0 : i32
    return %arg0, %c0_i32 : i32, i32
  }
}

</mosaic_0001>

<llo_original>
// kernel: tpu_custom_call.1
$region0: #{tpu_custom_call.1}
  #allocation0 [shape = 'u32[]', space=smem, size = 0x4, offset = 0x4, fixed_abs, tag = 'smem constant byte address 0x4 - core index']
  #allocation1 [shape = 'u32[144,128]{1,0:T(1,128)}', space=vmem, size = 0x12000, scoped, tag = 'internal scratch']
  %s0 = inlined_call_operand.hbm [shape: f32[16,128], index: 0, kind: input, shape index: {}]
  %s1 = inlined_call_operand.hbm [shape: bf16[128,128], index: 1, kind: input, shape index: {}]
  %s2 = inlined_call_operand.vmem [shape: f32[1,128], index: 2, kind: input, shape index: {}]
  %s3 = inlined_call_operand.vmem [shape: f32[1,128], index: 3, kind: input, shape index: {}]
  %s4 = inlined_call_operand.vmem [shape: f32[1,128], index: 4, kind: input, shape index: {}]
  %s5 = inlined_call_operand.hbm [shape: f32[16,128], index: 5, kind: output, shape index: {}]
  %s6 = sld [smem:[#allocation0]]
  $region38: #{tpu_custom_call.1} parent=0
    _
  %s8 = ssub.s32 1, %s6
  %s9 = scalar_select 0, %s8, %s6
  $region1: #{tpu_custom_call.1} parent=0
    #allocation2 [shape = 'u8[8192]{0}', space=vmem, size = 0x2000, scoped, tag = 'input window, operand 0, single buffered']
    #allocation3 [shape = 's32[1]{0}', space=sflag, size = 0x4, scoped, tag = 'scoped memory for tpu_custom_call.1']
    #allocation4 [shape = 's32[1]{0}', space=sflag, size = 0x4, scoped, tag = 'scoped memory for tpu_custom_call.1']
    #allocation5 [shape = 'u8[32768]{0}', space=vmem, size = 0x8000, scoped, tag = 'input window, operand 1, single buffered']
    #allocation6 [shape = 's32[1]{0}', space=sflag, size = 0x4, scoped, tag = 'scoped memory for tpu_custom_call.1']
    #allocation7 [shape = 'u8[8192]{0}', space=vmem, size = 0x2000, scoped, tag = 'output window, operand 0, single buffered']
    %10 = vsyncpa [#allocation3], 0
    %11 = vsyncpa [#allocation6], 0
    %12 = vsyncpa [#allocation4], 0
    // Predicated region
    $region2: #{tpu_custom_call.1} parent=1 // pred_check
      _
    $region3: #{tpu_custom_call.1} parent=1 // pred_check_branch
      %14 = sbr.rel (0) target = $region5
    $region4: #{tpu_custom_call.1} parent=1 // pred_region
      %s16 = ssub.s32 256, 256
      %17 = vsyncadd [#allocation3], %s16
      %s18 = sshll.u32 [#allocation2], 4
      %s19 = int_to_ptr.vmem [resolvable:$true] %s18
      %24 = dma.hbm_to_vmem [thread:$0]  %s0, 256, %s19, [#allocation3], 128, 128, 8
    $region5: #{tpu_custom_call.1} parent=1 // pred_fallthru
      _
    // Predicated region
    $region6: #{tpu_custom_call.1} parent=1 // pred_check
      _
    $region7: #{tpu_custom_call.1} parent=1 // pred_check_branch
      %26 = sbr.rel (0) target = $region9
    $region8: #{tpu_custom_call.1} parent=1 // pred_region
      %s28 = ssub.s32 1024, 1024
      %29 = vsyncadd [#allocation6], %s28
      %s30 = sshll.u32 [#allocation5], 4
      %s31 = int_to_ptr.vmem [resolvable:$true] %s30
      %36 = dma.hbm_to_vmem [thread:$0]  %s1, 1024, %s31, [#allocation6], 64, 64, 4
    $region9: #{tpu_custom_call.1} parent=1 // pred_fallthru
      _
    // Predicated region
    $region10: #{tpu_custom_call.1} parent=1 // pred_check
      _
    $region11: #{tpu_custom_call.1} parent=1 // pred_check_branch
      %38 = sbr.rel (0) target = $region13
    $region12: #{tpu_custom_call.1} parent=1 // pred_region
      _
    $region13: #{tpu_custom_call.1} parent=1 // pred_fallthru
      _
    // Predicated region
    $region14: #{tpu_custom_call.1} parent=1 // pred_check
      _
    $region15: #{tpu_custom_call.1} parent=1 // pred_check_branch
      %40 = sbr.rel (0) target = $region17
    $region16: #{tpu_custom_call.1} parent=1 // pred_region
      _
    $region17: #{tpu_custom_call.1} parent=1 // pred_fallthru
      _
    // Predicated region
    $region18: #{tpu_custom_call.1} parent=1 // pred_check
      _
    $region19: #{tpu_custom_call.1} parent=1 // pred_check_branch
      %42 = sbr.rel (0) target = $region21
    $region20: #{tpu_custom_call.1} parent=1 // pred_region
      _
    $region21: #{tpu_custom_call.1} parent=1 // pred_fallthru
      _
    // Predicated region
    $region22: #{tpu_custom_call.1} parent=1 // pred_check
      _
    $region23: #{tpu_custom_call.1} parent=1 // pred_check_branch
      %44 = sbr.rel (0) target = $region25
    $region24: #{tpu_custom_call.1} parent=1 // pred_region
      %45 = dma.done [#allocation3], 256
    $region25: #{tpu_custom_call.1} parent=1 // pred_fallthru
      _
    // Predicated region
    $region26: #{tpu_custom_call.1} parent=1 // pred_check
      _
    $region27: #{tpu_custom_call.1} parent=1 // pred_check_branch
      %47 = sbr.rel (0) target = $region29
    $region28: #{tpu_custom_call.1} parent=1 // pred_region
      %48 = dma.done [#allocation6], 1024
    $region29: #{tpu_custom_call.1} parent=1 // pred_fallthru
      _
    %v50 = vld [vmem:[#allocation2] sm:$0xff]
    %v51 = vld [vmem:[#allocation2 + $0x8] sm:$0xff]
    %v52 = vpack.c.bf16 %v51, %v50
    %v53 = vld [vmem:[#allocation5] sm:$0xf]
    %v54 = vld [vmem:[#allocation5 + $0x4] sm:$0xf]
    %v55 = vld [vmem:[#allocation5 + $0x8] sm:$0xf]
    %v56 = vld [vmem:[#allocation5 + $0xc] sm:$0xf]
    %v57 = vld [vmem:[#allocation5 + $0x10] sm:$0xf]
    %v58 = vld [vmem:[#allocation5 + $0x14] sm:$0xf]
    %v59 = vld [vmem:[#allocation5 + $0x18] sm:$0xf]
    %v60 = vld [vmem:[#allocation5 + $0x1c] sm:$0xf]
    %v61 = vld [vmem:[#allocation5 + $0x20] sm:$0xf]
    %v62 = vld [vmem:[#allocation5 + $0x24] sm:$0xf]
    %v63 = vld [vmem:[#allocation5 + $0x28] sm:$0xf]
    %v64 = vld [vmem:[#allocation5 + $0x2c] sm:$0xf]
    %v65 = vld [vmem:[#allocation5 + $0x30] sm:$0xf]
    %v66 = vld [vmem:[#allocation5 + $0x34] sm:$0xf]
    %v67 = vld [vmem:[#allocation5 + $0x38] sm:$0xf]
    %v68 = vld [vmem:[#allocation5 + $0x3c] sm:$0xf]
    %v85 = vunpack.c.l.b16 %v53
    %v86 = vunpack.c.l.b16 %v54
    %v87 = vunpack.c.l.b16 %v55
    %v88 = vunpack.c.l.b16 %v56
    %v89 = vunpack.c.l.b16 %v57
    %v90 = vunpack.c.l.b16 %v58
    %v91 = vunpack.c.l.b16 %v59
    %v92 = vunpack.c.l.b16 %v60
    %v93 = vunpack.c.l.b16 %v61
    %v94 = vunpack.c.l.b16 %v62
    %v95 = vunpack.c.l.b16 %v63
    %v96 = vunpack.c.l.b16 %v64
    %v97 = vunpack.c.l.b16 %v65
    %v98 = vunpack.c.l.b16 %v66
    %v99 = vunpack.c.l.b16 %v67
    %v100 = vunpack.c.l.b16 %v68
    %v101 = vpack.c.b16 %v86, %v85
    %v102 = vpack.c.b16 %v88, %v87
    %v103 = vpack.c.b16 %v90, %v89
    %v104 = vpack.c.b16 %v92, %v91
    %v105 = vpack.c.b16 %v94, %v93
    %v106 = vpack.c.b16 %v96, %v95
    %v107 = vpack.c.b16 %v98, %v97
    %v108 = vpack.c.b16 %v100, %v99
    %117 = vmatprep.subr.bf16.mxu0 0
    %118 = vmatpush1.bf16.msra.mxu0 %v101
    %119 = vmatprep.subr.bf16.mxu0 0
    %120 = vmatpush1.bf16.msra.mxu0 %v102
    %121 = vmatprep.subr.bf16.mxu0 0
    %122 = vmatpush1.bf16.msra.mxu0 %v103
    %123 = vmatprep.subr.bf16.mxu0 0
    %124 = vmatpush1.bf16.msra.mxu0 %v104
    %125 = vmatprep.subr.bf16.mxu0 0
    %126 = vmatpush1.bf16.msra.mxu0 %v105
    %127 = vmatprep.subr.bf16.mxu0 0
    %128 = vmatpush1.bf16.msra.mxu0 %v106
    %129 = vmatprep.subr.bf16.mxu0 0
    %130 = vmatpush1.bf16.msra.mxu0 %v107
    %131 = vmatprep.subr.bf16.mxu0 0
    %132 = vmatpush1.bf16.msra.mxu0 %v108
    %133 = vmatprep.subr.bf16.mxu0 0
    %134 = vmatpush1.bf16.msra.mxu0 0
    %135 = vmatprep.subr.bf16.mxu0 0
    %136 = vmatpush1.bf16.msra.mxu0 0
    %137 = vmatprep.subr.bf16.mxu0 0
    %138 = vmatpush1.bf16.msra.mxu0 0
    %139 = vmatprep.subr.bf16.mxu0 0
    %140 = vmatpush1.bf16.msra.mxu0 0
    %141 = vmatprep.subr.bf16.mxu0 0
    %142 = vmatpush1.bf16.msra.mxu0 0
    %143 = vmatprep.subr.bf16.mxu0 0
    %144 = vmatpush1.bf16.msra.mxu0 0
    %145 = vmatprep.subr.bf16.mxu0 0
    %146 = vmatpush1.bf16.msra.mxu0 0
    %147 = vmatprep.subr.bf16.mxu0 0
    %148 = vmatpush1.bf16.msra.mxu0 0
    %149 = vmatprep.mubr.bf16.mxu0 0
    %150 = vmatmul.mubr.bf16.gmra.mrb[0].mxu0 %v52
    %v151 = vpop.f32.mrb[0].mxu0
    %v152 = vadd.f32 0.0, %v151
    %v153 = vpop.f32.mrb[0].mxu0
    %v154 = vpop.f32.mrb[0].mxu0
    %v155 = vadd.f32 0.0, %v154
    %v156 = vpop.f32.mrb[0].mxu0
    %157 = vdwg.mxu0
    %v158 = vadd.f32 %v50, %v152
    %v159 = vadd.f32 %v51, %v155
    %v160 = vld [vmem:[%s2] sm:$0x1]
    %v162 = vlaneseq
    %v163 = vshrl.u32 %v162, 7
    %v164 = vsub.s32 0, %v163
    %v165 = vrot.slane %v160, %v164
    %v167 = vadd.f32 %v158, %v165
    %v168 = vadd.f32 %v159, %v165
    %169 = vadd.xlane.f32.xlu0 %v167
    %v170 = vpop.xlane.xlu0 %169
    %171 = vadd.xlane.f32.xlu0 %v168
    %v172 = vpop.xlane.xlu0 %171
    %v173 = vmul.f32 %v170, 0.03125
    %v174 = vmul.f32 %v172, 0.03125
    %v175 = vsub.f32 %v167, %v173
    %v176 = vsub.f32 %v168, %v174
    %v177 = vlaneseq
    %v178 = vand.u32 %v177, 127
    %vm179 = vcmp.lt.s32.totalorder %v178, 32
    %v180 = vsel %vm179, %v175, 0.0
    %v181 = vsel %vm179, %v176, 0.0
    %v182 = vmul.f32 %v180, %v180
    %v183 = vmul.f32 %v181, %v181
    %184 = vadd.xlane.f32.xlu0 %v182
    %v185 = vpop.xlane.xlu0 %184
    %186 = vadd.xlane.f32.xlu0 %v183
    %v187 = vpop.xlane.xlu0 %186
    %v188 = vmul.f32 %v185, 0.03125
    %v189 = vmul.f32 %v187, 0.03125
    %v190 = vadd.f32 %v188, 1e-05
    %v191 = vadd.f32 %v189, 1e-05
    %v192 = vrsqrt.pop %v190
    %v193 = vrsqrt.pop %v191
    %v194 = vmul.f32 %v180, %v192
    %v195 = vmul.f32 %v181, %v193
    %v196 = vld [vmem:[%s3] sm:$0x1]
    %v198 = vlaneseq
    %v199 = vshrl.u32 %v198, 7
    %v200 = vsub.s32 0, %v199
    %v201 = vrot.slane %v196, %v200
    %v203 = vmul.f32 %v194, %v201
    %v204 = vmul.f32 %v195, %v201
    %v205 = vld [vmem:[%s4] sm:$0x1]
    %v207 = vlaneseq
    %v208 = vshrl.u32 %v207, 7
    %v209 = vsub.s32 0, %v208
    %v210 = vrot.slane %v205, %v209
    %v212 = vadd.f32 %v203, %v210
    %v213 = vadd.f32 %v204, %v210
    %214 = vst [vmem:[#allocation7] sm:$0xff] %v212
    %215 = vst [vmem:[#allocation7 + $0x8] sm:$0xff] %v213
    // Predicated region
    $region30: #{tpu_custom_call.1} parent=1 // pred_check
      _
    $region31: #{tpu_custom_call.1} parent=1 // pred_check_branch
      %217 = sbr.rel (0) target = $region33
    $region32: #{tpu_custom_call.1} parent=1 // pred_region
      %s219 = ssub.s32 256, 256
      %220 = vsyncadd [#allocation4], %s219
      %s221 = sshll.u32 [#allocation7], 4
      %s222 = int_to_ptr.vmem [resolvable:$true] %s221
      %227 = dma.vmem_to_hbm [thread:$0]  %s222, 256, %s5, [#allocation4], 128, 128, 8
    $region33: #{tpu_custom_call.1} parent=1 // pred_fallthru
      _
    // Predicated region
    $region34: #{tpu_custom_call.1} parent=1 // pred_check
      _
    $region35: #{tpu_custom_call.1} parent=1 // pred_check_branch
      %229 = sbr.rel (0) target = $region37
    $region36: #{tpu_custom_call.1} parent=1 // pred_region
      %230 = dma.done [#allocation4], 256
    $region37: #{tpu_custom_call.1} parent=1 // pred_fallthru
      _
    %231 = vsyncpa [#allocation3], 1
    %232 = vsyncpa [#allocation6], 1
    %233 = vsyncpa [#allocation4], 1

// kernel: tpu_custom_call.1
$region0: #{tpu_custom_call.1}
  #allocation0 [shape = 'u32[]', space=smem, size = 0x4, offset = 0x4, fixed_abs, tag = 'smem constant byte address 0x4 - core index']
  #allocation1 [shape = 'u32[144,128]{1,0:T(1,128)}', space=vmem, size = 0x12000, scoped, tag = 'internal scratch']
  %s0 = inlined_call_operand.hbm [shape: f32[16,128], index: 0, kind: input, shape index: {}]
  %s1 = inlined_call_operand.hbm [shape: bf16[128,128], index: 1, kind: input, shape index: {}]
  %s2 = inlined_call_operand.vmem [shape: f32[1,128], index: 2, kind: input, shape index: {}]
  %s3 = inlined_call_operand.vmem [shape: f32[1,128], index: 3, kind: input, shape index: {}]
  %s4 = inlined_call_operand.vmem [shape: f32[1,128], index: 4, kind: input, shape index: {}]
  %s5 = inlined_call_operand.hbm [shape: f32[16,128], index: 5, kind: output, shape index: {}]
  %s6 = sld [smem:[#allocation0]]
  $region38: #{tpu_custom_call.1} parent=0
    _
  %s8 = ssub.s32 1, %s6
  %s9 = scalar_select 0, %s8, %s6
  $region1: #{tpu_custom_call.1} parent=0
    #allocation2 [shape = 'u8[8192]{0}', space=vmem, size = 0x2000, scoped, tag = 'input window, operand 0, single buffered']
    #allocation3 [shape = 's32[1]{0}', space=sflag, size = 0x4, scoped, tag = 'scoped memory for tpu_custom_call.1']
    #allocation4 [shape = 's32[1]{0}', space=sflag, size = 0x4, scoped, tag = 'scoped memory for tpu_custom_call.1']
    #allocation5 [shape = 'u8[32768]{0}', space=vmem, size = 0x8000, scoped, tag = 'input window, operand 1, single buffered']
    #allocation6 [shape = 's32[1]{0}', space=sflag, size = 0x4, scoped, tag = 'scoped memory for tpu_custom_call.1']
    #allocation7 [shape = 'u8[8192]{0}', space=vmem, size = 0x2000, scoped, tag = 'output window, operand 0, single buffered']
    %10 = vsyncpa [#allocation3], 0
    %11 = vsyncpa [#allocation6], 0
    %12 = vsyncpa [#allocation4], 0
    // Predicated region
    $region2: #{tpu_custom_call.1} parent=1 // pred_check
      _
    $region3: #{tpu_custom_call.1} parent=1 // pred_check_branch
      %14 = sbr.rel (0) target = $region5
    $region4: #{tpu_custom_call.1} parent=1 // pred_region
      %s16 = ssub.s32 256, 256
      %17 = vsyncadd [#allocation3], %s16
      %s18 = sshll.u32 [#allocation2], 4
      %s19 = int_to_ptr.vmem [resolvable:$true] %s18
      %24 = dma.hbm_to_vmem [thread:$0]  %s0, 256, %s19, [#allocation3], 128, 128, 8
    $region5: #{tpu_custom_call.1} parent=1 // pred_fallthru
      _
    // Predicated region
    $region6: #{tpu_custom_call.1} parent=1 // pred_check
      _
    $region7: #{tpu_custom_call.1} parent=1 // pred_check_branch
      %26 = sbr.rel (0) target = $region9
    $region8: #{tpu_custom_call.1} parent=1 // pred_region
      %s28 = ssub.s32 1024, 1024
      %29 = vsyncadd [#allocation6], %s28
      %s30 = sshll.u32 [#allocation5], 4
      %s31 = int_to_ptr.vmem [resolvable:$true] %s30
      %36 = dma.hbm_to_vmem [thread:$0]  %s1, 1024, %s31, [#allocation6], 64, 64, 4
    $region9: #{tpu_custom_call.1} parent=1 // pred_fallthru
      _
    // Predicated region
    $region10: #{tpu_custom_call.1} parent=1 // pred_check
      _
    $region11: #{tpu_custom_call.1} parent=1 // pred_check_branch
      %38 = sbr.rel (0) target = $region13
    $region12: #{tpu_custom_call.1} parent=1 // pred_region
      _
    $region13: #{tpu_custom_call.1} parent=1 // pred_fallthru
      _
    // Predicated region
    $region14: #{tpu_custom_call.1} parent=1 // pred_check
      _
    $region15: #{tpu_custom_call.1} parent=1 // pred_check_branch
      %40 = sbr.rel (0) target = $region17
    $region16: #{tpu_custom_call.1} parent=1 // pred_region
      _
    $region17: #{tpu_custom_call.1} parent=1 // pred_fallthru
      _
    // Predicated region
    $region18: #{tpu_custom_call.1} parent=1 // pred_check
      _
    $region19: #{tpu_custom_call.1} parent=1 // pred_check_branch
      %42 = sbr.rel (0) target = $region21
    $region20: #{tpu_custom_call.1} parent=1 // pred_region
      _
    $region21: #{tpu_custom_call.1} parent=1 // pred_fallthru
      _
    // Predicated region
    $region22: #{tpu_custom_call.1} parent=1 // pred_check
      _
    $region23: #{tpu_custom_call.1} parent=1 // pred_check_branch
      %44 = sbr.rel (0) target = $region25
    $region24: #{tpu_custom_call.1} parent=1 // pred_region
      %45 = dma.done [#allocation3], 256
    $region25: #{tpu_custom_call.1} parent=1 // pred_fallthru
      _
    // Predicated region
    $region26: #{tpu_custom_call.1} parent=1 // pred_check
      _
    $region27: #{tpu_custom_call.1} parent=1 // pred_check_branch
      %47 = sbr.rel (0) target = $region29
    $region28: #{tpu_custom_call.1} parent=1 // pred_region
      %48 = dma.done [#allocation6], 1024
    $region29: #{tpu_custom_call.1} parent=1 // pred_fallthru
      _
    %v50 = vld [vmem:[#allocation2] sm:$0xff]
    %v51 = vld [vmem:[#allocation2 + $0x8] sm:$0xff]
    %v52 = vpack.c.bf16 %v51, %v50
    %v53 = vld [vmem:[#allocation5] sm:$0xf]
    %v54 = vld [vmem:[#allocation5 + $0x4] sm:$0xf]
    %v55 = vld [vmem:[#allocation5 + $0x8] sm:$0xf]
    %v56 = vld [vmem:[#allocation5 + $0xc] sm:$0xf]
    %v57 = vld [vmem:[#allocation5 + $0x10] sm:$0xf]
    %v58 = vld [vmem:[#allocation5 + $0x14] sm:$0xf]
    %v59 = vld [vmem:[#allocation5 + $0x18] sm:$0xf]
    %v60 = vld [vmem:[#allocation5 + $0x1c] sm:$0xf]
    %v61 = vld [vmem:[#allocation5 + $0x20] sm:$0xf]
    %v62 = vld [vmem:[#allocation5 + $0x24] sm:$0xf]
    %v63 = vld [vmem:[#allocation5 + $0x28] sm:$0xf]
    %v64 = vld [vmem:[#allocation5 + $0x2c] sm:$0xf]
    %v65 = vld [vmem:[#allocation5 + $0x30] sm:$0xf]
    %v66 = vld [vmem:[#allocation5 + $0x34] sm:$0xf]
    %v67 = vld [vmem:[#allocation5 + $0x38] sm:$0xf]
    %v68 = vld [vmem:[#allocation5 + $0x3c] sm:$0xf]
    %v85 = vunpack.c.l.b16 %v53
    %v86 = vunpack.c.l.b16 %v54
    %v87 = vunpack.c.l.b16 %v55
    %v88 = vunpack.c.l.b16 %v56
    %v89 = vunpack.c.l.b16 %v57
    %v90 = vunpack.c.l.b16 %v58
    %v91 = vunpack.c.l.b16 %v59
    %v92 = vunpack.c.l.b16 %v60
    %v93 = vunpack.c.l.b16 %v61
    %v94 = vunpack.c.l.b16 %v62
    %v95 = vunpack.c.l.b16 %v63
    %v96 = vunpack.c.l.b16 %v64
    %v97 = vunpack.c.l.b16 %v65
    %v98 = vunpack.c.l.b16 %v66
    %v99 = vunpack.c.l.b16 %v67
    %v100 = vunpack.c.l.b16 %v68
    %v101 = vpack.c.b16 %v86, %v85
    %v102 = vpack.c.b16 %v88, %v87
    %v103 = vpack.c.b16 %v90, %v89
    %v104 = vpack.c.b16 %v92, %v91
    %v105 = vpack.c.b16 %v94, %v93
    %v106 = vpack.c.b16 %v96, %v95
    %v107 = vpack.c.b16 %v98, %v97
    %v108 = vpack.c.b16 %v100, %v99
    %117 = vmatprep.subr.bf16.mxu0 0
    %118 = vmatpush1.bf16.msra.mxu0 %v101
    %119 = vmatprep.subr.bf16.mxu0 0
    %120 = vmatpush1.bf16.msra.mxu0 %v102
    %121 = vmatprep.subr.bf16.mxu0 0
    %122 = vmatpush1.bf16.msra.mxu0 %v103
    %123 = vmatprep.subr.bf16.mxu0 0
    %124 = vmatpush1.bf16.msra.mxu0 %v104
    %125 = vmatprep.subr.bf16.mxu0 0
    %126 = vmatpush1.bf16.msra.mxu0 %v105
    %127 = vmatprep.subr.bf16.mxu0 0
    %128 = vmatpush1.bf16.msra.mxu0 %v106
    %129 = vmatprep.subr.bf16.mxu0 0
    %130 = vmatpush1.bf16.msra.mxu0 %v107
    %131 = vmatprep.subr.bf16.mxu0 0
    %132 = vmatpush1.bf16.msra.mxu0 %v108
    %133 = vmatprep.subr.bf16.mxu0 0
    %134 = vmatpush1.bf16.msra.mxu0 0
    %135 = vmatprep.subr.bf16.mxu0 0
    %136 = vmatpush1.bf16.msra.mxu0 0
    %137 = vmatprep.subr.bf16.mxu0 0
    %138 = vmatpush1.bf16.msra.mxu0 0
    %139 = vmatprep.subr.bf16.mxu0 0
    %140 = vmatpush1.bf16.msra.mxu0 0
    %141 = vmatprep.subr.bf16.mxu0 0
    %142 = vmatpush1.bf16.msra.mxu0 0
    %143 = vmatprep.subr.bf16.mxu0 0
    %144 = vmatpush1.bf16.msra.mxu0 0
    %145 = vmatprep.subr.bf16.mxu0 0
    %146 = vmatpush1.bf16.msra.mxu0 0
    %147 = vmatprep.subr.bf16.mxu0 0
    %148 = vmatpush1.bf16.msra.mxu0 0
    %149 = vmatprep.mubr.bf16.mxu0 0
    %150 = vmatmul.mubr.bf16.gmra.mrb[0].mxu0 %v52
    %v151 = vpop.f32.mrb[0].mxu0
    %v152 = vadd.f32 0.0, %v151
    %v153 = vpop.f32.mrb[0].mxu0
    %v154 = vpop.f32.mrb[0].mxu0
    %v155 = vadd.f32 0.0, %v154
    %v156 = vpop.f32.mrb[0].mxu0
    %157 = vdwg.mxu0
    %v158 = vadd.f32 %v50, %v152
    %v159 = vadd.f32 %v51, %v155
    %v160 = vld [vmem:[%s2] sm:$0x1]
    %v162 = vlaneseq
    %v163 = vshrl.u32 %v162, 7
    %v164 = vsub.s32 0, %v163
    %v165 = vrot.slane %v160, %v164
    %v167 = vadd.f32 %v158, %v165
    %v168 = vadd.f32 %v159, %v165
    %169 = vadd.xlane.f32.xlu0 %v167
    %v170 = vpop.xlane.xlu0 %169
    %171 = vadd.xlane.f32.xlu0 %v168
    %v172 = vpop.xlane.xlu0 %171
    %v173 = vmul.f32 %v170, 0.03125
    %v174 = vmul.f32 %v172, 0.03125
    %v175 = vsub.f32 %v167, %v173
    %v176 = vsub.f32 %v168, %v174
    %v177 = vlaneseq
    %v178 = vand.u32 %v177, 127
    %vm179 = vcmp.lt.s32.totalorder %v178, 32
    %v180 = vsel %vm179, %v175, 0.0
    %v181 = vsel %vm179, %v176, 0.0
    %v182 = vmul.f32 %v180, %v180
    %v183 = vmul.f32 %v181, %v181
    %184 = vadd.xlane.f32.xlu0 %v182
    %v185 = vpop.xlane.xlu0 %184
    %186 = vadd.xlane.f32.xlu0 %v183
    %v187 = vpop.xlane.xlu0 %186
    %v188 = vmul.f32 %v185, 0.03125
    %v189 = vmul.f32 %v187, 0.03125
    %v190 = vadd.f32 %v188, 1e-05
    %v191 = vadd.f32 %v189, 1e-05
    %v192 = vrsqrt.pop %v190
    %v193 = vrsqrt.pop %v191
    %v194 = vmul.f32 %v180, %v192
    %v195 = vmul.f32 %v181, %v193
    %v196 = vld [vmem:[%s3] sm:$0x1]
    %v198 = vlaneseq
    %v199 = vshrl.u32 %v198, 7
    %v200 = vsub.s32 0, %v199
    %v201 = vrot.slane %v196, %v200
    %v203 = vmul.f32 %v194, %v201
    %v204 = vmul.f32 %v195, %v201
    %v205 = vld [vmem:[%s4] sm:$0x1]
    %v207 = vlaneseq
    %v208 = vshrl.u32 %v207, 7
    %v209 = vsub.s32 0, %v208
    %v210 = vrot.slane %v205, %v209
    %v212 = vadd.f32 %v203, %v210
    %v213 = vadd.f32 %v204, %v210
    %214 = vst [vmem:[#allocation7] sm:$0xff] %v212
    %215 = vst [vmem:[#allocation7 + $0x8] sm:$0xff] %v213
    // Predicated region
    $region30: #{tpu_custom_call.1} parent=1 // pred_check
      _
    $region31: #{tpu_custom_call.1} parent=1 // pred_check_branch
      %217 = sbr.rel (0) target = $region33
    $region32: #{tpu_custom_call.1} parent=1 // pred_region
      %s219 = ssub.s32 256, 256
      %220 = vsyncadd [#allocation4], %s219
      %s221 = sshll.u32 [#allocation7], 4
      %s222 = int_to_ptr.vmem [resolvable:$true] %s221
      %227 = dma.vmem_to_hbm [thread:$0]  %s222, 256, %s5, [#allocation4], 128, 128, 8
    $region33: #{tpu_custom_call.1} parent=1 // pred_fallthru
      _
    // Predicated region
    $region34: #{tpu_custom_call.1} parent=1 // pred_check
      _
    $region35: #{tpu_custom_call.1} parent=1 // pred_check_branch
      %229 = sbr.rel (0) target = $region37
    $region36: #{tpu_custom_call.1} parent=1 // pred_region
      %230 = dma.done [#allocation4], 256
    $region37: #{tpu_custom_call.1} parent=1 // pred_fallthru
      _
    %231 = vsyncpa [#allocation3], 1
    %232 = vsyncpa [#allocation6], 1
    %233 = vsyncpa [#allocation4], 1

</llo_original>
